<compile_context>
chip_gen: v7x
topology: tpu7x:2x2x1
jax: 0.10.0
libtpu: 0.0.40
codegen_flags: <defaults>
</compile_context>

<pallas_src>
import jax
import jax.numpy as jnp
from jax.experimental import pallas as pl
from jax.experimental.pallas import tpu as pltpu


def _scale_kernel(a_ref, x_ref, o_ref):
    # Pure streaming elementwise scale: (TM, 1) broadcast over (TM, TN).
    o_ref[...] = x_ref[...] * a_ref[...]


def _round_up(v, m):
    return ((v + m - 1) // m) * m


def scale_attention(x, t, w1, b1, w2, b2, *, tm_target=512, tn_target=4096):
    """Forward of EdgeSR Scale_Atttention.

    x: (N, C, H, W) NCHW; t: (C, 1); w1, w2: (C, C); b1, b2: (C, 1).
    """
    N, C, H, W = x.shape
    assert w1.shape == (C, C) and w2.shape == (C, C), "module requires c_in == c_out"
    assert t.shape == (C, 1) and b1.shape == (C, 1) and b2.shape == (C, 1)

    # --- Tiny attention MLP hoisted out of the kernel (runs once total,
    #     not once per grid step; avoids MXU-padded matmuls in the kernel).
    h = w1.astype(jnp.float32) @ t.astype(jnp.float32) + b1.astype(jnp.float32)
    h = h * jax.nn.sigmoid(h)                                   # SiLU
    a = jax.nn.sigmoid(
        w2.astype(jnp.float32) @ h + b2.astype(jnp.float32))    # (C, 1) attention

    # Per-row scale for the (N*C, HW) layout (tiny: N*C elements).
    a_rows = jnp.tile(a.reshape(C, 1), (N, 1)).astype(x.dtype)  # (N*C, 1)

    rows, cols = N * C, H * W
    xf = x.reshape(rows, cols)

    itemsize = jnp.dtype(x.dtype).itemsize
    # Dtype-aware sublane packing: 8 for 32-bit, 16 for 16-bit, 32 for 8-bit.
    sub = max(8, 32 // max(1, itemsize))

    # --- Tile sizes.  No padding: Pallas masks the ragged boundary blocks.
    tm = min(tm_target, _round_up(rows, sub))
    # Prefer >= 2 row blocks (when rows allow) so both v7x TensorCores get
    # work even if the column axis collapses to a single block.
    if rows > sub and pl.cdiv(rows, tm) < 2:
        tm = _round_up(pl.cdiv(rows, 2), sub)
    tn = min(tn_target, _round_up(cols, 128))

    grid = (pl.cdiv(rows, tm), pl.cdiv(cols, tn))

    cost = pl.CostEstimate(
        flops=rows * cols,
        transcendentals=0,
        bytes_accessed=2 * rows * cols * itemsize + rows * itemsize,
    )

    out = pl.pallas_call(
        _scale_kernel,
        out_shape=jax.ShapeDtypeStruct((rows, cols), x.dtype),
        grid_spec=pltpu.PrefetchScalarGridSpec(
            num_scalar_prefetch=0,
            grid=grid,
            in_specs=[
                pl.BlockSpec((tm, 1), lambda i, j: (i, 0)),     # per-row scale
                pl.BlockSpec((tm, tn), lambda i, j: (i, j)),    # x tile
            ],
            out_specs=pl.BlockSpec((tm, tn), lambda i, j: (i, j)),
        ),
        compiler_params=pltpu.CompilerParams(
            dimension_semantics=("parallel", "parallel"),
            # 4 x 8 MiB tiles (double-buffered in + out) = 32 MiB; 48 MiB
            # leaves headroom under v7x's 64 MiB physical per-TC VMEM and is
            # comfortably within v5e/v6e's 128 MiB.
            vmem_limit_bytes=48 << 20,
        ),
        # Alias x to the output: no second N*C*H*W HBM allocation.
        input_output_aliases={1: 0},
        cost_estimate=cost,
    )(a_rows, xf)

    return out.reshape(N, C, H, W)


def _reference(x, t, w1, b1, w2, b2):
    h = w1 @ t + b1
    h = h * jax.nn.sigmoid(h)
    a = jax.nn.sigmoid(w2 @ h + b2)          # (C, 1)
    return a.reshape(1, -1, 1, 1) * x


if __name__ == "__main__":
    # Small shapes consistent with the module: c_in == c_out == 4, 16x16 spatial.
    N, C, H, W = 2, 4, 16, 16
    scale = 0.5
    # conv1 stride `s` has no effect on a 1x1 spatial input.

    key = jax.random.PRNGKey(0)
    kx, kw1, kb1, kw2, kb2 = jax.random.split(key, 5)

    x = jax.random.normal(kx, (N, C, H, W), dtype=jnp.float32)

    # Deterministic synthetic parameters (no checkpoint load).
    t = scale * jnp.ones((C, 1), dtype=jnp.float32)     # nn.Parameter scale*ones
    w1 = 0.1 * jax.random.normal(kw1, (C, C), dtype=jnp.float32)
    b1 = 0.1 * jax.random.normal(kb1, (C, 1), dtype=jnp.float32)
    w2 = 0.1 * jax.random.normal(kw2, (C, C), dtype=jnp.float32)
    b2 = 0.1 * jax.random.normal(kb2, (C, 1), dtype=jnp.float32)

    # Compute reference first (kernel output buffer may alias its x input).
    ref = _reference(x, t, w1, b1, w2, b2)
    ref = jax.block_until_ready(ref)

    out = scale_attention(x, t, w1, b1, w2, b2)
    out = jax.block_until_ready(out)

    assert out.shape == (N, C, H, W)
    assert jnp.allclose(out, ref, atol=1e-5, rtol=1e-5), "mismatch vs reference"

    print("KERNEL_OK")
</pallas_src>

<mosaic_0001>
module attributes {stable_mosaic.version = 11 : i64} {
  func.func @_scale_kernel(%arg0: i32, %arg1: i32, %arg2: memref<8x1xf32, #tpu.memory_space<vmem>>, %arg3: memref<8x256xf32, #tpu.memory_space<vmem>>, %arg4: memref<8x256xf32, #tpu.memory_space<vmem>>) attributes {dimension_semantics = [#tpu.dimension_semantics<parallel>, #tpu.dimension_semantics<parallel>], iteration_bounds = array<i64: 1, 1>, scalar_prefetch = 0 : i64, scratch_operands = 0 : i64, tpu.core_type = #tpu.core_type<tc>, window_params = [{transform_indices = @transform_0, window_bounds = array<i64: 8, 1>}, {transform_indices = @transform_1, window_bounds = array<i64: 8, 256>}, {transform_indices = @transform_2, window_bounds = array<i64: 8, 256>}]} {
    %c0 = arith.constant 0 : index
    %c0_0 = arith.constant 0 : index
    %0 = vector.load %arg3[%c0, %c0_0] : memref<8x256xf32, #tpu.memory_space<vmem>>, vector<8x256xf32>
    %c0_1 = arith.constant 0 : index
    %c0_2 = arith.constant 0 : index
    %1 = vector.load %arg2[%c0_1, %c0_2] : memref<8x1xf32, #tpu.memory_space<vmem>>, vector<8x1xf32>
    %2 = vector.broadcast %1 : vector<8x1xf32> to vector<8x256xf32>
    %3 = arith.mulf %0, %2 : vector<8x256xf32>
    %c0_3 = arith.constant 0 : index
    %c0_4 = arith.constant 0 : index
    %4 = vector.load %arg4[%c0_3, %c0_4] : memref<8x256xf32, #tpu.memory_space<vmem>>, vector<8x256xf32>
    tpu.vector_store %arg4[%c0_3, %c0_4], %3 {strides = array<i32>} : memref<8x256xf32, #tpu.memory_space<vmem>>, vector<8x256xf32>,
    return
  }
  func.func @transform_0(%arg0: i32, %arg1: i32) -> (i32, i32) {
    %c0_i32 = arith.constant 0 : i32
    %c0_i32_0 = arith.constant 0 : i32
    return %arg0, %c0_i32 : i32, i32
  }
  func.func @transform_1(%arg0: i32, %arg1: i32) -> (i32, i32) {
    %c0_i32 = arith.constant 0 : i32
    return %arg0, %arg1 : i32, i32
  }
  func.func @transform_2(%arg0: i32, %arg1: i32) -> (i32, i32) {
    %c0_i32 = arith.constant 0 : i32
    return %arg0, %arg1 : i32, i32
  }
}

</mosaic_0001>

<llo_original>
// kernel: tpu_custom_call.1
$region0: #{tpu_custom_call.1}
  #allocation0 [shape = 'u32[]', space=smem, size = 0x4, offset = 0x4, fixed_abs, tag = 'smem constant byte address 0x4 - core index']
  #allocation1 [shape = 'u32[144,128]{1,0:T(1,128)}', space=vmem, size = 0x12000, scoped, tag = 'internal scratch']
  %s0 = inlined_call_operand.vmem [shape: f32[8,1], index: 0, kind: input, shape index: {}]
  %s1 = inlined_call_operand.hbm [shape: f32[8,256], index: 1, kind: input, shape index: {}, may-alias: {1,2}]
  %s2 = inlined_call_operand.hbm [shape: f32[8,256], index: 2, kind: output, shape index: {}, may-alias: {1,2}]
  %s3 = sld [smem:[#allocation0]]
  $region22: #{tpu_custom_call.1} parent=0
    _
  %s5 = ssub.s32 1, %s3
  %s6 = scalar_select 0, %s5, %s3
  $region1: #{tpu_custom_call.1} parent=0
    #allocation2 [shape = 'u8[8192]{0}', space=vmem, size = 0x2000, scoped, tag = 'input window, operand 1, single buffered']
    #allocation3 [shape = 's32[1]{0}', space=sflag, size = 0x4, scoped, tag = 'scoped memory for tpu_custom_call.1']
    #allocation4 [shape = 's32[1]{0}', space=sflag, size = 0x4, scoped, tag = 'scoped memory for tpu_custom_call.1']
    #allocation5 [shape = 'u8[8192]{0}', space=vmem, size = 0x2000, scoped, tag = 'output window, operand 0, single buffered']
    %7 = vsyncpa [#allocation3], 0
    %8 = vsyncpa [#allocation4], 0
    // Predicated region
    $region2: #{tpu_custom_call.1} parent=1 // pred_check
      _
    $region3: #{tpu_custom_call.1} parent=1 // pred_check_branch
      %10 = sbr.rel (0) target = $region5
    $region4: #{tpu_custom_call.1} parent=1 // pred_region
      _
    $region5: #{tpu_custom_call.1} parent=1 // pred_fallthru
      _
    // Predicated region
    $region6: #{tpu_custom_call.1} parent=1 // pred_check
      _
    $region7: #{tpu_custom_call.1} parent=1 // pred_check_branch
      %12 = sbr.rel (0) target = $region9
    $region8: #{tpu_custom_call.1} parent=1 // pred_region
      %s14 = ssub.s32 256, 256
      %15 = vsyncadd [#allocation3], %s14
      %s17 = sshll.u32 [#allocation2], 4
      %s18 = int_to_ptr.vmem [resolvable:$true] %s17
      %20 = dma.hbm_to_vmem [thread:$0]  %s1, 256, %s18, [#allocation3]
    $region9: #{tpu_custom_call.1} parent=1 // pred_fallthru
      _
    // Predicated region
    $region10: #{tpu_custom_call.1} parent=1 // pred_check
      _
    $region11: #{tpu_custom_call.1} parent=1 // pred_check_branch
      %22 = sbr.rel (0) target = $region13
    $region12: #{tpu_custom_call.1} parent=1 // pred_region
      %23 = dma.done [#allocation3], 256
    $region13: #{tpu_custom_call.1} parent=1 // pred_fallthru
      _
    %v24 = vld [vmem:[#allocation2] sm:$0xff]
    %v25 = vld [vmem:[#allocation2 + $0x8] sm:$0xff]
    %v26 = vld [vmem:[%s0] sm:$0xff]
    %28 = vset.pattern.permute.xlu0 0
    %29 = vperm.xlu0 %28, %v26
    %v30 = vpop.permute.xlu0 %29
    %v32 = vmul.f32 %v24, %v30
    %v33 = vmul.f32 %v25, %v30
    %34 = vst [vmem:[#allocation5] sm:$0xff] %v32
    %35 = vst [vmem:[#allocation5 + $0x8] sm:$0xff] %v33
    // Predicated region
    $region14: #{tpu_custom_call.1} parent=1 // pred_check
      _
    $region15: #{tpu_custom_call.1} parent=1 // pred_check_branch
      %37 = sbr.rel (0) target = $region17
    $region16: #{tpu_custom_call.1} parent=1 // pred_region
      %s39 = ssub.s32 256, 256
      %40 = vsyncadd [#allocation4], %s39
      %s42 = sshll.u32 [#allocation5], 4
      %s43 = int_to_ptr.vmem [resolvable:$true] %s42
      %45 = dma.vmem_to_hbm [thread:$0]  %s43, 256, %s2, [#allocation4]
    $region17: #{tpu_custom_call.1} parent=1 // pred_fallthru
      _
    // Predicated region
    $region18: #{tpu_custom_call.1} parent=1 // pred_check
      _
    $region19: #{tpu_custom_call.1} parent=1 // pred_check_branch
      %47 = sbr.rel (0) target = $region21
    $region20: #{tpu_custom_call.1} parent=1 // pred_region
      %48 = dma.done [#allocation4], 256
    $region21: #{tpu_custom_call.1} parent=1 // pred_fallthru
      _
    %49 = vsyncpa [#allocation3], 1
    %50 = vsyncpa [#allocation4], 1

</llo_original>
